<compile_context>
chip_gen: v7x
topology: tpu7x:2x2x1
jax: 0.10.0
libtpu: 0.0.40
codegen_flags: <defaults>
</compile_context>

<pallas_src>
import functools

import jax
import jax.numpy as jnp
from jax import lax
from jax.experimental import pallas as pl
from jax.experimental.pallas import tpu as pltpu


def _round_up(x, m):
    return ((x + m - 1) // m) * m


# Per-block output footprint for pass 2 (x2 for double buffering).
_PASS2_TILE_BYTES = 2 * 1024 * 1024


def _pick_pass2_tiles(e_pad, itemsize=4):
    """Row/col tile sizes that divide e_pad; full-width lane tiles preferred."""
    divs = [d for d in (8, 16, 32, 64, 128, 256, 512, 1024, 2048, 4096)
            if e_pad % d == 0]
    divs.append(e_pad)  # e_pad is a multiple of 128, so always a valid lane tile
    # Lane (last-dim) tile: as wide as possible (unmasked full-width stores),
    # but leave room for at least an 8-row block inside the byte budget.
    tn = max(d for d in divs
             if d % 128 == 0 and 8 * d * itemsize <= _PASS2_TILE_BYTES)
    # Sublane tile: biggest divisor keeping the block within the budget.
    tm = max(d for d in divs if d * tn * itemsize <= _PASS2_TILE_BYTES)
    return tm, tn


# ---------------------------------------------------------------------------
# Pass 1: per-edge terms  s[e] = <h[src[e]], h[dst[e]]>,  b[e] = bias[src]+bias[dst]
# ---------------------------------------------------------------------------
def _edge_terms_kernel(idx_ref, h_ref, s_ref, b_ref, *, d_feat):
    # idx_ref: [2*te, 1] int32 -- first te rows = src tile, next te rows = dst tile
    # h_ref:   [N_pad, D_pad] f32 -- [ h | bias | 0-pad ] on a lane-dense axis
    two_te = idx_ref.shape[0]
    te = two_te // 2
    n_pad = h_ref.shape[0]
    d_pad = h_ref.shape[1]

    idx = idx_ref[...]                                              # [2te, 1]
    node_ids = lax.broadcasted_iota(jnp.int32, (two_te, n_pad), 1)  # [2te, N]
    onehot = (node_ids == idx).astype(jnp.float32)                  # [2te, N]

    # One MXU matmul gathers features AND biases for both endpoints.
    g = jnp.dot(onehot, h_ref[...], preferred_element_type=jnp.float32)  # [2te, Dp]
    g_src = g[:te]
    g_dst = g[te:]

    lane = lax.broadcasted_iota(jnp.int32, (te, d_pad), 1)
    # u_dot_v over the true feature columns only (bias column / zero-pad excluded).
    s_ref[...] = jnp.sum(jnp.where(lane < d_feat, g_src * g_dst, 0.0),
                         axis=-1, keepdims=True)                    # [te, 1]
    # bias[src] + bias[dst] sits in the fused bias column (lane == d_feat).
    b_ref[...] = jnp.sum(jnp.where(lane == d_feat, g_src + g_dst, 0.0),
                         axis=-1, keepdims=True)                    # [te, 1]


# ---------------------------------------------------------------------------
# Pass 2: pair_score[i, j] = s[i] + b[j]   (tiled broadcast-add, store-bound)
# ---------------------------------------------------------------------------
def _broadcast_add_kernel(s_ref, b_ref, out_ref):
    # [tm, 1] + [1, tn] -> [tm, tn]; lane-dense, unmasked full-width stores.
    out_ref[...] = s_ref[...] + b_ref[...]


def item_to_item_score(h, bias, src, dst):
    """h: [N, D] f32, bias: [N] f32, src/dst: [E] int  ->  pair_score [E, E] f32."""
    N, D = h.shape
    E = src.shape[0]
    f32 = jnp.float32

    # ---- layout / padding ----------------------------------------------------
    te = 128                                   # edges per pass-1 tile
    e_pad = _round_up(E, te)                   # minimal lane-dense edge padding
    n_et = e_pad // te
    n_pad = _round_up(N, 8)
    d_pad = _round_up(D + 1, 128)              # features + fused bias column

    src_pad = jnp.zeros((e_pad,), jnp.int32).at[:E].set(src.astype(jnp.int32))
    dst_pad = jnp.zeros((e_pad,), jnp.int32).at[:E].set(dst.astype(jnp.int32))
    # Tile-interleave [src tile 0 ; dst tile 0 ; src tile 1 ; dst tile 1 ; ...]
    # so each pass-1 grid step reads one contiguous [2*te, 1] block.
    idx_col = jnp.stack([src_pad.reshape(n_et, te),
                         dst_pad.reshape(n_et, te)], axis=1).reshape(2 * e_pad, 1)

    h_aug = jnp.zeros((n_pad, d_pad), f32)
    h_aug = h_aug.at[:N, :D].set(h.astype(f32))
    h_aug = h_aug.at[:N, D].set(bias.astype(f32))

    # ---- pass 1: per-edge s / b ------------------------------------------------
    s_col, b_col = pl.pallas_call(
        functools.partial(_edge_terms_kernel, d_feat=D),
        out_shape=(jax.ShapeDtypeStruct((e_pad, 1), f32),
                   jax.ShapeDtypeStruct((e_pad, 1), f32)),
        grid_spec=pltpu.PrefetchScalarGridSpec(
            num_scalar_prefetch=0,
            grid=(n_et,),
            in_specs=[pl.BlockSpec((2 * te, 1), lambda i: (i, 0)),
                      pl.BlockSpec((n_pad, d_pad), lambda i: (0, 0))],
            out_specs=[pl.BlockSpec((te, 1), lambda i: (i, 0)),
                       pl.BlockSpec((te, 1), lambda i: (i, 0))]),
        compiler_params=pltpu.CompilerParams(
            dimension_semantics=("parallel",)),
        cost_estimate=pl.CostEstimate(
            flops=2 * (2 * e_pad) * n_pad * d_pad + 3 * e_pad * d_pad,
            transcendentals=0,
            bytes_accessed=4 * (n_pad * d_pad + 4 * e_pad)),
    )(idx_col, h_aug)

    b_row = b_col.reshape(1, e_pad)

    # ---- pass 2: tiled [e_pad, e_pad] broadcast-add ----------------------------
    tm, tn = _pick_pass2_tiles(e_pad)
    out_pad = pl.pallas_call(
        _broadcast_add_kernel,
        out_shape=jax.ShapeDtypeStruct((e_pad, e_pad), f32),
        grid_spec=pltpu.PrefetchScalarGridSpec(
            num_scalar_prefetch=0,
            grid=(e_pad // tm, e_pad // tn),
            in_specs=[pl.BlockSpec((tm, 1), lambda i, j: (i, 0)),
                      pl.BlockSpec((1, tn), lambda i, j: (0, j))],
            out_specs=pl.BlockSpec((tm, tn), lambda i, j: (i, j))),
        compiler_params=pltpu.CompilerParams(
            dimension_semantics=("parallel", "parallel")),
        cost_estimate=pl.CostEstimate(
            flops=e_pad * e_pad,
            transcendentals=0,
            bytes_accessed=4 * (e_pad * e_pad + 2 * e_pad)),
    )(s_col, b_row)

    if e_pad == E:
        return out_pad
    return out_pad[:E, :E]


if __name__ == "__main__":
    # Small, deterministic example consistent with the module's forward:
    #   N = 16 items (nodes), D = 32 hidden, E = 8 sampled item-item edges.
    N, D, E = 16, 32, 8
    key = jax.random.PRNGKey(0)
    k_h, k_b, k_src, k_dst = jax.random.split(key, 4)

    h = jax.random.normal(k_h, (N, D), dtype=jnp.float32)
    # Module __init__ uses nn.Parameter(torch.zeros(n_nodes)); use small non-zero
    # values so the bias path is actually exercised.
    bias = 0.1 * jax.random.normal(k_b, (N,), dtype=jnp.float32)
    src = jax.random.randint(k_src, (E,), 0, N, dtype=jnp.int32)
    dst = jax.random.randint(k_dst, (E,), 0, N, dtype=jnp.int32)

    scorer = jax.jit(item_to_item_score)
    pair_score = jax.block_until_ready(scorer(h, bias, src, dst))

    # Pure-JAX reference (mirrors the PyTorch broadcasting exactly).
    s_ref = jnp.sum(h[src] * h[dst], axis=-1, keepdims=True)          # [E, 1]
    ref = s_ref + bias[src][None, :] + bias[dst][None, :]             # [E, E]

    assert pair_score.shape == (E, E)
    assert jnp.allclose(pair_score, ref, atol=1e-4, rtol=1e-4)
    print("KERNEL_OK")
</pallas_src>

<mosaic_0001>
module attributes {stable_mosaic.version = 11 : i64} {
  func.func @_broadcast_add_kernel(%arg0: i32, %arg1: i32, %arg2: memref<128x1xf32, #tpu.memory_space<vmem>>, %arg3: memref<1x128xf32, #tpu.memory_space<vmem>>, %arg4: memref<128x128xf32, #tpu.memory_space<vmem>>) attributes {dimension_semantics = [#tpu.dimension_semantics<parallel>, #tpu.dimension_semantics<parallel>], iteration_bounds = array<i64: 1, 1>, scalar_prefetch = 0 : i64, scratch_operands = 0 : i64, tpu.core_type = #tpu.core_type<tc>, window_params = [{transform_indices = @transform_0, window_bounds = array<i64: 128, 1>}, {transform_indices = @transform_1, window_bounds = array<i64: 1, 128>}, {transform_indices = @transform_2, window_bounds = array<i64: 128, 128>}]} {
    %c0 = arith.constant 0 : index
    %c0_0 = arith.constant 0 : index
    %0 = vector.load %arg2[%c0, %c0_0] : memref<128x1xf32, #tpu.memory_space<vmem>>, vector<128x1xf32>
    %c0_1 = arith.constant 0 : index
    %c0_2 = arith.constant 0 : index
    %1 = vector.load %arg3[%c0_1, %c0_2] : memref<1x128xf32, #tpu.memory_space<vmem>>, vector<1x128xf32>
    %2 = vector.broadcast %0 : vector<128x1xf32> to vector<128x128xf32>
    %3 = vector.broadcast %1 : vector<1x128xf32> to vector<128x128xf32>
    %4 = arith.addf %2, %3 : vector<128x128xf32>
    %c0_3 = arith.constant 0 : index
    %c0_4 = arith.constant 0 : index
    %5 = vector.load %arg4[%c0_3, %c0_4] : memref<128x128xf32, #tpu.memory_space<vmem>>, vector<128x128xf32>
    tpu.vector_store %arg4[%c0_3, %c0_4], %4 {strides = array<i32>} : memref<128x128xf32, #tpu.memory_space<vmem>>, vector<128x128xf32>,
    return
  }
  func.func @transform_0(%arg0: i32, %arg1: i32) -> (i32, i32) {
    %c0_i32 = arith.constant 0 : i32
    %c0_i32_0 = arith.constant 0 : i32
    return %arg0, %c0_i32 : i32, i32
  }
  func.func @transform_1(%arg0: i32, %arg1: i32) -> (i32, i32) {
    %c0_i32 = arith.constant 0 : i32
    %c0_i32_0 = arith.constant 0 : i32
    return %c0_i32, %arg1 : i32, i32
  }
  func.func @transform_2(%arg0: i32, %arg1: i32) -> (i32, i32) {
    %c0_i32 = arith.constant 0 : i32
    return %arg0, %arg1 : i32, i32
  }
}

module attributes {stable_mosaic.version = 11 : i64} {
  func.func @_edge_terms_kernel(%arg0: i32, %arg1: memref<256x1xi32, #tpu.memory_space<vmem>>, %arg2: memref<16x128xf32, #tpu.memory_space<vmem>>, %arg3: memref<128x1xf32, #tpu.memory_space<vmem>>, %arg4: memref<128x1xf32, #tpu.memory_space<vmem>>) attributes {dimension_semantics = [#tpu.dimension_semantics<parallel>], iteration_bounds = array<i64: 1>, scalar_prefetch = 0 : i64, scratch_operands = 0 : i64, tpu.core_type = #tpu.core_type<tc>, window_params = [{transform_indices = @transform_0, window_bounds = array<i64: 256, 1>}, {pipeline_mode = #tpu.pipeline_mode<synchronous>, transform_indices = @transform_1, window_bounds = array<i64: 16, 128>}, {transform_indices = @transform_2, window_bounds = array<i64: 128, 1>}, {transform_indices = @transform_3, window_bounds = array<i64: 128, 1>}]} {
    %c0 = arith.constant 0 : index
    %c0_0 = arith.constant 0 : index
    %0 = vector.load %arg1[%c0, %c0_0] : memref<256x1xi32, #tpu.memory_space<vmem>>, vector<256x1xi32>
    %1 = tpu.iota {dimensions = array<i32: 1>} : vector<256x16xi32>
    %2 = vector.broadcast %0 : vector<256x1xi32> to vector<256x16xi32>
    %3 = arith.cmpi eq, %1, %2 : vector<256x16xi32>
    %4 = arith.extui %3 : vector<256x16xi1> to vector<256x16xi32>
    %5 = arith.sitofp %4 : vector<256x16xi32> to vector<256x16xf32>
    %c0_1 = arith.constant 0 : index
    %c0_2 = arith.constant 0 : index
    %6 = vector.load %arg2[%c0_1, %c0_2] : memref<16x128xf32, #tpu.memory_space<vmem>>, vector<16x128xf32>
    %cst = arith.constant dense<0.000000e+00> : vector<256x128xf32>
    %7 = tpu.matmul %5, %6, %cst {dimension_numbers = #tpu.dot_dimension_numbers<[1], [0], [0], [1], [0, 0, 1, 1], [], []>} : vector<256x16xf32>, vector<16x128xf32>, vector<256x128xf32> -> vector<256x128xf32>
    %8 = vector.extract_strided_slice %7 {offsets = [0, 0], sizes = [128, 128], strides = [1, 1]} : vector<256x128xf32> to vector<128x128xf32>
    %9 = vector.extract_strided_slice %7 {offsets = [128, 0], sizes = [128, 128], strides = [1, 1]} : vector<256x128xf32> to vector<128x128xf32>
    %10 = tpu.iota {dimensions = array<i32: 1>} : vector<128x128xi32>
    %c32_i32 = arith.constant 32 : i32
    %11 = vector.broadcast %c32_i32 : i32 to vector<128x128xi32>
    %12 = arith.cmpi slt, %10, %11 : vector<128x128xi32>
    %13 = arith.mulf %8, %9 : vector<128x128xf32>
    %cst_3 = arith.constant 0.000000e+00 : f32
    %14 = vector.broadcast %cst_3 : f32 to vector<128x128xf32>
    %15 = arith.select %12, %13, %14 : vector<128x128xi1>, vector<128x128xf32>
    %cst_4 = arith.constant dense<0.000000e+00> : vector<128xf32>
    %16 = vector.multi_reduction <add>, %15, %cst_4 [1] : vector<128x128xf32> to vector<128xf32>
    %17 = vector.shape_cast %16 : vector<128xf32> to vector<128x1xf32>
    %c0_5 = arith.constant 0 : index
    %c0_6 = arith.constant 0 : index
    %18 = vector.load %arg3[%c0_5, %c0_6] : memref<128x1xf32, #tpu.memory_space<vmem>>, vector<128x1xf32>
    tpu.vector_store %arg3[%c0_5, %c0_6], %17 {strides = array<i32>} : memref<128x1xf32, #tpu.memory_space<vmem>>, vector<128x1xf32>,
    %c32_i32_7 = arith.constant 32 : i32
    %19 = vector.broadcast %c32_i32_7 : i32 to vector<128x128xi32>
    %20 = arith.cmpi eq, %10, %19 : vector<128x128xi32>
    %21 = arith.addf %8, %9 : vector<128x128xf32>
    %cst_8 = arith.constant 0.000000e+00 : f32
    %22 = vector.broadcast %cst_8 : f32 to vector<128x128xf32>
    %23 = arith.select %20, %21, %22 : vector<128x128xi1>, vector<128x128xf32>
    %cst_9 = arith.constant dense<0.000000e+00> : vector<128xf32>
    %24 = vector.multi_reduction <add>, %23, %cst_9 [1] : vector<128x128xf32> to vector<128xf32>
    %25 = vector.shape_cast %24 : vector<128xf32> to vector<128x1xf32>
    %c0_10 = arith.constant 0 : index
    %c0_11 = arith.constant 0 : index
    %26 = vector.load %arg4[%c0_10, %c0_11] : memref<128x1xf32, #tpu.memory_space<vmem>>, vector<128x1xf32>
    tpu.vector_store %arg4[%c0_10, %c0_11], %25 {strides = array<i32>} : memref<128x1xf32, #tpu.memory_space<vmem>>, vector<128x1xf32>,
    return
  }
  func.func @transform_0(%arg0: i32) -> (i32, i32) {
    %c0_i32 = arith.constant 0 : i32
    %c0_i32_0 = arith.constant 0 : i32
    return %arg0, %c0_i32 : i32, i32
  }
  func.func @transform_1(%arg0: i32) -> (i32, i32) {
    %c0_i32 = arith.constant 0 : i32
    %c0_i32_0 = arith.constant 0 : i32
    %c0_i32_1 = arith.constant 0 : i32
    return %c0_i32, %c0_i32_0 : i32, i32
  }
  func.func @transform_2(%arg0: i32) -> (i32, i32) {
    %c0_i32 = arith.constant 0 : i32
    %c0_i32_0 = arith.constant 0 : i32
    return %arg0, %c0_i32 : i32, i32
  }
  func.func @transform_3(%arg0: i32) -> (i32, i32) {
    %c0_i32 = arith.constant 0 : i32
    %c0_i32_0 = arith.constant 0 : i32
    return %arg0, %c0_i32 : i32, i32
  }
}

</mosaic_0001>

<llo_original>
// kernel: item_to_item_score.3
$region0: #{item_to_item_score.3}
  #allocation0 [shape = 'u32[]', space=smem, size = 0x4, offset = 0x4, fixed_abs, tag = 'smem constant byte address 0x4 - core index']
  #allocation1 [shape = 'u32[144,128]{1,0:T(1,128)}', space=vmem, size = 0x12000, scoped, tag = 'internal scratch']
  %s0 = inlined_call_operand.vmem [shape: f32[128,1], index: 0, kind: input, shape index: {}]
  %s1 = inlined_call_operand.vmem [shape: f32[1,128], index: 1, kind: input, shape index: {}]
  %s2 = inlined_call_operand.vmem [shape: f32[128,128], index: 2, kind: output, shape index: {}]
  %s3 = sld [smem:[#allocation0]]
  $region18: #{item_to_item_score.3} parent=0
    _
  %s5 = ssub.s32 1, %s3
  %s6 = scalar_select 0, %s5, %s3
  // Predicated region
  $region2: #{item_to_item_score.3} parent=0 // pred_check
    _
  $region3: #{item_to_item_score.3} parent=0 // pred_check_branch
    %8 = sbr.rel (0) target = $region5
  $region4: #{item_to_item_score.3} parent=0 // pred_region
    _
  $region5: #{item_to_item_score.3} parent=0 // pred_fallthru
    _
  // Predicated region
  $region6: #{item_to_item_score.3} parent=0 // pred_check
    _
  $region7: #{item_to_item_score.3} parent=0 // pred_check_branch
    %10 = sbr.rel (0) target = $region9
  $region8: #{item_to_item_score.3} parent=0 // pred_region
    _
  $region9: #{item_to_item_score.3} parent=0 // pred_fallthru
    _
  %v11 = vld [vmem:[%s0] sm:$0xff]
  %v12 = vld [vmem:[%s0 + $0x8] sm:$0xff]
  %v13 = vld [vmem:[%s0 + $0x10] sm:$0xff]
  %v14 = vld [vmem:[%s0 + $0x18] sm:$0xff]
  %v15 = vld [vmem:[%s0 + $0x20] sm:$0xff]
  %v16 = vld [vmem:[%s0 + $0x28] sm:$0xff]
  %v17 = vld [vmem:[%s0 + $0x30] sm:$0xff]
  %v18 = vld [vmem:[%s0 + $0x38] sm:$0xff]
  %v19 = vld [vmem:[%s0 + $0x40] sm:$0xff]
  %v20 = vld [vmem:[%s0 + $0x48] sm:$0xff]
  %v21 = vld [vmem:[%s0 + $0x50] sm:$0xff]
  %v22 = vld [vmem:[%s0 + $0x58] sm:$0xff]
  %v23 = vld [vmem:[%s0 + $0x60] sm:$0xff]
  %v24 = vld [vmem:[%s0 + $0x68] sm:$0xff]
  %v25 = vld [vmem:[%s0 + $0x70] sm:$0xff]
  %v26 = vld [vmem:[%s0 + $0x78] sm:$0xff]
  %v27 = vld [vmem:[%s1] sm:$0x1]
  %29 = vset.pattern.permute.xlu0 0
  %30 = vperm.xlu0 %29, %v11
  %v31 = vpop.permute.xlu0 %30
  %34 = vset.pattern.permute.xlu0 0
  %35 = vperm.xlu0 %34, %v12
  %v36 = vpop.permute.xlu0 %35
  %39 = vset.pattern.permute.xlu0 0
  %40 = vperm.xlu0 %39, %v13
  %v41 = vpop.permute.xlu0 %40
  %44 = vset.pattern.permute.xlu0 0
  %45 = vperm.xlu0 %44, %v14
  %v46 = vpop.permute.xlu0 %45
  %49 = vset.pattern.permute.xlu0 0
  %50 = vperm.xlu0 %49, %v15
  %v51 = vpop.permute.xlu0 %50
  %54 = vset.pattern.permute.xlu0 0
  %55 = vperm.xlu0 %54, %v16
  %v56 = vpop.permute.xlu0 %55
  %59 = vset.pattern.permute.xlu0 0
  %60 = vperm.xlu0 %59, %v17
  %v61 = vpop.permute.xlu0 %60
  %64 = vset.pattern.permute.xlu0 0
  %65 = vperm.xlu0 %64, %v18
  %v66 = vpop.permute.xlu0 %65
  %69 = vset.pattern.permute.xlu0 0
  %70 = vperm.xlu0 %69, %v19
  %v71 = vpop.permute.xlu0 %70
  %74 = vset.pattern.permute.xlu0 0
  %75 = vperm.xlu0 %74, %v20
  %v76 = vpop.permute.xlu0 %75
  %79 = vset.pattern.permute.xlu0 0
  %80 = vperm.xlu0 %79, %v21
  %v81 = vpop.permute.xlu0 %80
  %84 = vset.pattern.permute.xlu0 0
  %85 = vperm.xlu0 %84, %v22
  %v86 = vpop.permute.xlu0 %85
  %89 = vset.pattern.permute.xlu0 0
  %90 = vperm.xlu0 %89, %v23
  %v91 = vpop.permute.xlu0 %90
  %94 = vset.pattern.permute.xlu0 0
  %95 = vperm.xlu0 %94, %v24
  %v96 = vpop.permute.xlu0 %95
  %99 = vset.pattern.permute.xlu0 0
  %100 = vperm.xlu0 %99, %v25
  %v101 = vpop.permute.xlu0 %100
  %104 = vset.pattern.permute.xlu0 0
  %105 = vperm.xlu0 %104, %v26
  %v106 = vpop.permute.xlu0 %105
  %v109 = vlaneseq
  %v110 = vshrl.u32 %v109, 7
  %v111 = vsub.s32 0, %v110
  %v112 = vrot.slane %v27, %v111
  %v114 = vadd.f32 %v31, %v112
  %v115 = vadd.f32 %v36, %v112
  %v116 = vadd.f32 %v41, %v112
  %v117 = vadd.f32 %v46, %v112
  %v118 = vadd.f32 %v51, %v112
  %v119 = vadd.f32 %v56, %v112
  %v120 = vadd.f32 %v61, %v112
  %v121 = vadd.f32 %v66, %v112
  %v122 = vadd.f32 %v71, %v112
  %v123 = vadd.f32 %v76, %v112
  %v124 = vadd.f32 %v81, %v112
  %v125 = vadd.f32 %v86, %v112
  %v126 = vadd.f32 %v91, %v112
  %v127 = vadd.f32 %v96, %v112
  %v128 = vadd.f32 %v101, %v112
  %v129 = vadd.f32 %v106, %v112
  %130 = vst [vmem:[%s2] sm:$0xff] %v114
  %131 = vst [vmem:[%s2 + $0x8] sm:$0xff] %v115
  %132 = vst [vmem:[%s2 + $0x10] sm:$0xff] %v116
  %133 = vst [vmem:[%s2 + $0x18] sm:$0xff] %v117
  %134 = vst [vmem:[%s2 + $0x20] sm:$0xff] %v118
  %135 = vst [vmem:[%s2 + $0x28] sm:$0xff] %v119
  %136 = vst [vmem:[%s2 + $0x30] sm:$0xff] %v120
  %137 = vst [vmem:[%s2 + $0x38] sm:$0xff] %v121
  %138 = vst [vmem:[%s2 + $0x40] sm:$0xff] %v122
  %139 = vst [vmem:[%s2 + $0x48] sm:$0xff] %v123
  %140 = vst [vmem:[%s2 + $0x50] sm:$0xff] %v124
  %141 = vst [vmem:[%s2 + $0x58] sm:$0xff] %v125
  %142 = vst [vmem:[%s2 + $0x60] sm:$0xff] %v126
  %143 = vst [vmem:[%s2 + $0x68] sm:$0xff] %v127
  %144 = vst [vmem:[%s2 + $0x70] sm:$0xff] %v128
  %145 = vst [vmem:[%s2 + $0x78] sm:$0xff] %v129
  // Predicated region
  $region10: #{item_to_item_score.3} parent=0 // pred_check
    _
  $region11: #{item_to_item_score.3} parent=0 // pred_check_branch
    %147 = sbr.rel (0) target = $region13
  $region12: #{item_to_item_score.3} parent=0 // pred_region
    _
  $region13: #{item_to_item_score.3} parent=0 // pred_fallthru
    _
  // Predicated region
  $region14: #{item_to_item_score.3} parent=0 // pred_check
    _
  $region15: #{item_to_item_score.3} parent=0 // pred_check_branch
    %149 = sbr.rel (0) target = $region17
  $region16: #{item_to_item_score.3} parent=0 // pred_region
    _
  $region17: #{item_to_item_score.3} parent=0 // pred_fallthru
    _

// kernel: item_to_item_score.2
$region0: #{item_to_item_score.2}
  #allocation0 [shape = 'u32[]', space=smem, size = 0x4, offset = 0x4, fixed_abs, tag = 'smem constant byte address 0x4 - core index']
  #allocation1 [shape = 'u32[144,128]{1,0:T(1,128)}', space=vmem, size = 0x12000, scoped, tag = 'internal scratch']
  %s0 = inlined_call_operand.vmem [shape: s32[256,1], index: 0, kind: input, shape index: {}]
  %s1 = inlined_call_operand.vmem [shape: f32[16,128], index: 1, kind: input, shape index: {}]
  %s2 = inlined_call_operand.vmem [shape: f32[128,1], index: 2, kind: output, shape index: {0}]
  %s3 = inlined_call_operand.vmem [shape: f32[128,1], index: 3, kind: output, shape index: {1}]
  %4 = xla_tuple %s2, %s3
  %s5 = sld [smem:[#allocation0]]
  $region26: #{item_to_item_score.2} parent=0
    _
  %s7 = ssub.s32 1, %s5
  %s8 = scalar_select 0, %s7, %s5
  // Predicated region
  $region2: #{item_to_item_score.2} parent=0 // pred_check
    _
  $region3: #{item_to_item_score.2} parent=0 // pred_check_branch
    %10 = sbr.rel (0) target = $region5
  $region4: #{item_to_item_score.2} parent=0 // pred_region
    _
  $region5: #{item_to_item_score.2} parent=0 // pred_fallthru
    _
  // Predicated region
  $region6: #{item_to_item_score.2} parent=0 // pred_check
    _
  $region7: #{item_to_item_score.2} parent=0 // pred_check_branch
    %12 = sbr.rel (0) target = $region9
  $region8: #{item_to_item_score.2} parent=0 // pred_region
    _
  $region9: #{item_to_item_score.2} parent=0 // pred_fallthru
    _
  %v13 = vld [vmem:[%s0] sm:$0xff]
  %v14 = vld [vmem:[%s0 + $0x8] sm:$0xff]
  %v15 = vld [vmem:[%s0 + $0x10] sm:$0xff]
  %v16 = vld [vmem:[%s0 + $0x18] sm:$0xff]
  %v17 = vld [vmem:[%s0 + $0x20] sm:$0xff]
  %v18 = vld [vmem:[%s0 + $0x28] sm:$0xff]
  %v19 = vld [vmem:[%s0 + $0x30] sm:$0xff]
  %v20 = vld [vmem:[%s0 + $0x38] sm:$0xff]
  %v21 = vld [vmem:[%s0 + $0x40] sm:$0xff]
  %v22 = vld [vmem:[%s0 + $0x48] sm:$0xff]
  %v23 = vld [vmem:[%s0 + $0x50] sm:$0xff]
  %v24 = vld [vmem:[%s0 + $0x58] sm:$0xff]
  %v25 = vld [vmem:[%s0 + $0x60] sm:$0xff]
  %v26 = vld [vmem:[%s0 + $0x68] sm:$0xff]
  %v27 = vld [vmem:[%s0 + $0x70] sm:$0xff]
  %v28 = vld [vmem:[%s0 + $0x78] sm:$0xff]
  %v29 = vld [vmem:[%s0 + $0x80] sm:$0xff]
  %v30 = vld [vmem:[%s0 + $0x88] sm:$0xff]
  %v31 = vld [vmem:[%s0 + $0x90] sm:$0xff]
  %v32 = vld [vmem:[%s0 + $0x98] sm:$0xff]
  %v33 = vld [vmem:[%s0 + $0xa0] sm:$0xff]
  %v34 = vld [vmem:[%s0 + $0xa8] sm:$0xff]
  %v35 = vld [vmem:[%s0 + $0xb0] sm:$0xff]
  %v36 = vld [vmem:[%s0 + $0xb8] sm:$0xff]
  %v37 = vld [vmem:[%s0 + $0xc0] sm:$0xff]
  %v38 = vld [vmem:[%s0 + $0xc8] sm:$0xff]
  %v39 = vld [vmem:[%s0 + $0xd0] sm:$0xff]
  %v40 = vld [vmem:[%s0 + $0xd8] sm:$0xff]
  %v41 = vld [vmem:[%s0 + $0xe0] sm:$0xff]
  %v42 = vld [vmem:[%s0 + $0xe8] sm:$0xff]
  %v43 = vld [vmem:[%s0 + $0xf0] sm:$0xff]
  %v44 = vld [vmem:[%s0 + $0xf8] sm:$0xff]
  %v45 = vlaneseq
  %v46 = vand.u32 %v45, 127
  %47 = vset.pattern.permute.xlu0 0
  %48 = vperm.xlu0 %47, %v13
  %v49 = vpop.permute.xlu0 %48
  %50 = vset.pattern.permute.xlu0 0
  %51 = vperm.xlu0 %50, %v14
  %v52 = vpop.permute.xlu0 %51
  %53 = vset.pattern.permute.xlu0 0
  %54 = vperm.xlu0 %53, %v15
  %v55 = vpop.permute.xlu0 %54
  %56 = vset.pattern.permute.xlu0 0
  %57 = vperm.xlu0 %56, %v16
  %v58 = vpop.permute.xlu0 %57
  %59 = vset.pattern.permute.xlu0 0
  %60 = vperm.xlu0 %59, %v17
  %v61 = vpop.permute.xlu0 %60
  %62 = vset.pattern.permute.xlu0 0
  %63 = vperm.xlu0 %62, %v18
  %v64 = vpop.permute.xlu0 %63
  %65 = vset.pattern.permute.xlu0 0
  %66 = vperm.xlu0 %65, %v19
  %v67 = vpop.permute.xlu0 %66
  %68 = vset.pattern.permute.xlu0 0
  %69 = vperm.xlu0 %68, %v20
  %v70 = vpop.permute.xlu0 %69
  %71 = vset.pattern.permute.xlu0 0
  %72 = vperm.xlu0 %71, %v21
  %v73 = vpop.permute.xlu0 %72
  %74 = vset.pattern.permute.xlu0 0
  %75 = vperm.xlu0 %74, %v22
  %v76 = vpop.permute.xlu0 %75
  %77 = vset.pattern.permute.xlu0 0
  %78 = vperm.xlu0 %77, %v23
  %v79 = vpop.permute.xlu0 %78
  %80 = vset.pattern.permute.xlu0 0
  %81 = vperm.xlu0 %80, %v24
  %v82 = vpop.permute.xlu0 %81
  %83 = vset.pattern.permute.xlu0 0
  %84 = vperm.xlu0 %83, %v25
  %v85 = vpop.permute.xlu0 %84
  %86 = vset.pattern.permute.xlu0 0
  %87 = vperm.xlu0 %86, %v26
  %v88 = vpop.permute.xlu0 %87
  %89 = vset.pattern.permute.xlu0 0
  %90 = vperm.xlu0 %89, %v27
  %v91 = vpop.permute.xlu0 %90
  %92 = vset.pattern.permute.xlu0 0
  %93 = vperm.xlu0 %92, %v28
  %v94 = vpop.permute.xlu0 %93
  %95 = vset.pattern.permute.xlu0 0
  %96 = vperm.xlu0 %95, %v29
  %v97 = vpop.permute.xlu0 %96
  %98 = vset.pattern.permute.xlu0 0
  %99 = vperm.xlu0 %98, %v30
  %v100 = vpop.permute.xlu0 %99
  %101 = vset.pattern.permute.xlu0 0
  %102 = vperm.xlu0 %101, %v31
  %v103 = vpop.permute.xlu0 %102
  %104 = vset.pattern.permute.xlu0 0
  %105 = vperm.xlu0 %104, %v32
  %v106 = vpop.permute.xlu0 %105
  %107 = vset.pattern.permute.xlu0 0
  %108 = vperm.xlu0 %107, %v33
  %v109 = vpop.permute.xlu0 %108
  %110 = vset.pattern.permute.xlu0 0
  %111 = vperm.xlu0 %110, %v34
  %v112 = vpop.permute.xlu0 %111
  %113 = vset.pattern.permute.xlu0 0
  %114 = vperm.xlu0 %113, %v35
  %v115 = vpop.permute.xlu0 %114
  %116 = vset.pattern.permute.xlu0 0
  %117 = vperm.xlu0 %116, %v36
  %v118 = vpop.permute.xlu0 %117
  %119 = vset.pattern.permute.xlu0 0
  %120 = vperm.xlu0 %119, %v37
  %v121 = vpop.permute.xlu0 %120
  %122 = vset.pattern.permute.xlu0 0
  %123 = vperm.xlu0 %122, %v38
  %v124 = vpop.permute.xlu0 %123
  %125 = vset.pattern.permute.xlu0 0
  %126 = vperm.xlu0 %125, %v39
  %v127 = vpop.permute.xlu0 %126
  %128 = vset.pattern.permute.xlu0 0
  %129 = vperm.xlu0 %128, %v40
  %v130 = vpop.permute.xlu0 %129
  %131 = vset.pattern.permute.xlu0 0
  %132 = vperm.xlu0 %131, %v41
  %v133 = vpop.permute.xlu0 %132
  %134 = vset.pattern.permute.xlu0 0
  %135 = vperm.xlu0 %134, %v42
  %v136 = vpop.permute.xlu0 %135
  %137 = vset.pattern.permute.xlu0 0
  %138 = vperm.xlu0 %137, %v43
  %v139 = vpop.permute.xlu0 %138
  %140 = vset.pattern.permute.xlu0 0
  %141 = vperm.xlu0 %140, %v44
  %v142 = vpop.permute.xlu0 %141
  %vm143 = vcmp.eq.s32.totalorder %v46, %v49
  %vm144 = vcmp.eq.s32.totalorder %v46, %v52
  %vm145 = vcmp.eq.s32.totalorder %v46, %v55
  %vm146 = vcmp.eq.s32.totalorder %v46, %v58
  %vm147 = vcmp.eq.s32.totalorder %v46, %v61
  %vm148 = vcmp.eq.s32.totalorder %v46, %v64
  %vm149 = vcmp.eq.s32.totalorder %v46, %v67
  %vm150 = vcmp.eq.s32.totalorder %v46, %v70
  %vm151 = vcmp.eq.s32.totalorder %v46, %v73
  %vm152 = vcmp.eq.s32.totalorder %v46, %v76
  %vm153 = vcmp.eq.s32.totalorder %v46, %v79
  %vm154 = vcmp.eq.s32.totalorder %v46, %v82
  %vm155 = vcmp.eq.s32.totalorder %v46, %v85
  %vm156 = vcmp.eq.s32.totalorder %v46, %v88
  %vm157 = vcmp.eq.s32.totalorder %v46, %v91
  %vm158 = vcmp.eq.s32.totalorder %v46, %v94
  %vm159 = vcmp.eq.s32.totalorder %v46, %v97
  %vm160 = vcmp.eq.s32.totalorder %v46, %v100
  %vm161 = vcmp.eq.s32.totalorder %v46, %v103
  %vm162 = vcmp.eq.s32.totalorder %v46, %v106
  %vm163 = vcmp.eq.s32.totalorder %v46, %v109
  %vm164 = vcmp.eq.s32.totalorder %v46, %v112
  %vm165 = vcmp.eq.s32.totalorder %v46, %v115
  %vm166 = vcmp.eq.s32.totalorder %v46, %v118
  %vm167 = vcmp.eq.s32.totalorder %v46, %v121
  %vm168 = vcmp.eq.s32.totalorder %v46, %v124
  %vm169 = vcmp.eq.s32.totalorder %v46, %v127
  %vm170 = vcmp.eq.s32.totalorder %v46, %v130
  %vm171 = vcmp.eq.s32.totalorder %v46, %v133
  %vm172 = vcmp.eq.s32.totalorder %v46, %v136
  %vm173 = vcmp.eq.s32.totalorder %v46, %v139
  %vm174 = vcmp.eq.s32.totalorder %v46, %v142
  %v175 = vsel %vm143, 1, 0
  %v176 = vsel %vm144, 1, 0
  %v177 = vsel %vm145, 1, 0
  %v178 = vsel %vm146, 1, 0
  %v179 = vsel %vm147, 1, 0
  %v180 = vsel %vm148, 1, 0
  %v181 = vsel %vm149, 1, 0
  %v182 = vsel %vm150, 1, 0
  %v183 = vsel %vm151, 1, 0
  %v184 = vsel %vm152, 1, 0
  %v185 = vsel %vm153, 1, 0
  %v186 = vsel %vm154, 1, 0
  %v187 = vsel %vm155, 1, 0
  %v188 = vsel %vm156, 1, 0
  %v189 = vsel %vm157, 1, 0
  %v190 = vsel %vm158, 1, 0
  %v191 = vsel %vm159, 1, 0
  %v192 = vsel %vm160, 1, 0
  %v193 = vsel %vm161, 1, 0
  %v194 = vsel %vm162, 1, 0
  %v195 = vsel %vm163, 1, 0
  %v196 = vsel %vm164, 1, 0
  %v197 = vsel %vm165, 1, 0
  %v198 = vsel %vm166, 1, 0
  %v199 = vsel %vm167, 1, 0
  %v200 = vsel %vm168, 1, 0
  %v201 = vsel %vm169, 1, 0
  %v202 = vsel %vm170, 1, 0
  %v203 = vsel %vm171, 1, 0
  %v204 = vsel %vm172, 1, 0
  %v205 = vsel %vm173, 1, 0
  %v206 = vsel %vm174, 1, 0
  %v207 = vcvt.s32.f32 %v175
  %v208 = vcvt.s32.f32 %v176
  %v209 = vcvt.s32.f32 %v177
  %v210 = vcvt.s32.f32 %v178
  %v211 = vcvt.s32.f32 %v179
  %v212 = vcvt.s32.f32 %v180
  %v213 = vcvt.s32.f32 %v181
  %v214 = vcvt.s32.f32 %v182
  %v215 = vcvt.s32.f32 %v183
  %v216 = vcvt.s32.f32 %v184
  %v217 = vcvt.s32.f32 %v185
  %v218 = vcvt.s32.f32 %v186
  %v219 = vcvt.s32.f32 %v187
  %v220 = vcvt.s32.f32 %v188
  %v221 = vcvt.s32.f32 %v189
  %v222 = vcvt.s32.f32 %v190
  %v223 = vcvt.s32.f32 %v191
  %v224 = vcvt.s32.f32 %v192
  %v225 = vcvt.s32.f32 %v193
  %v226 = vcvt.s32.f32 %v194
  %v227 = vcvt.s32.f32 %v195
  %v228 = vcvt.s32.f32 %v196
  %v229 = vcvt.s32.f32 %v197
  %v230 = vcvt.s32.f32 %v198
  %v231 = vcvt.s32.f32 %v199
  %v232 = vcvt.s32.f32 %v200
  %v233 = vcvt.s32.f32 %v201
  %v234 = vcvt.s32.f32 %v202
  %v235 = vcvt.s32.f32 %v203
  %v236 = vcvt.s32.f32 %v204
  %v237 = vcvt.s32.f32 %v205
  %v238 = vcvt.s32.f32 %v206
  %v239 = vld [vmem:[%s1] sm:$0xff]
  %v240 = vld [vmem:[%s1 + $0x8] sm:$0xff]
  %vm241 = vcmask 130048
  %v243 = vsel %vm241, %v207, 0
  %v246 = vsel %vm241, %v208, 0
  %v249 = vsel %vm241, %v209, 0
  %v252 = vsel %vm241, %v210, 0
  %v255 = vsel %vm241, %v211, 0
  %v258 = vsel %vm241, %v212, 0
  %v261 = vsel %vm241, %v213, 0
  %v264 = vsel %vm241, %v214, 0
  %v267 = vsel %vm241, %v215, 0
  %v270 = vsel %vm241, %v216, 0
  %v273 = vsel %vm241, %v217, 0
  %v276 = vsel %vm241, %v218, 0
  %v279 = vsel %vm241, %v219, 0
  %v282 = vsel %vm241, %v220, 0
  %v285 = vsel %vm241, %v221, 0
  %v288 = vsel %vm241, %v222, 0
  %v291 = vsel %vm241, %v223, 0
  %v294 = vsel %vm241, %v224, 0
  %v297 = vsel %vm241, %v225, 0
  %v300 = vsel %vm241, %v226, 0
  %v303 = vsel %vm241, %v227, 0
  %v306 = vsel %vm241, %v228, 0
  %v309 = vsel %vm241, %v229, 0
  %v312 = vsel %vm241, %v230, 0
  %v315 = vsel %vm241, %v231, 0
  %v318 = vsel %vm241, %v232, 0
  %v321 = vsel %vm241, %v233, 0
  %v324 = vsel %vm241, %v234, 0
  %v327 = vsel %vm241, %v235, 0
  %v330 = vsel %vm241, %v236, 0
  %v333 = vsel %vm241, %v237, 0
  %v336 = vsel %vm241, %v238, 0
  %338 = vmatprep.subr.mxu0 0.0
  %339 = vmatpush1.msra.mxu0 %v239
  %340 = vmatprep.subr.mxu0 0.0
  %341 = vmatpush1.msra.mxu0 %v240
  %342 = vmatprep.subr.mxu0 0.0
  %343 = vmatpush1.msra.mxu0 0.0
  %344 = vmatprep.subr.mxu0 0.0
  %345 = vmatpush1.msra.mxu0 0.0
  %346 = vmatprep.subr.mxu0 0.0
  %347 = vmatpush1.msra.mxu0 0.0
  %348 = vmatprep.subr.mxu0 0.0
  %349 = vmatpush1.msra.mxu0 0.0
  %350 = vmatprep.subr.mxu0 0.0
  %351 = vmatpush1.msra.mxu0 0.0
  %352 = vmatprep.subr.mxu0 0.0
  %353 = vmatpush1.msra.mxu0 0.0
  %354 = vmatprep.subr.mxu0 0.0
  %355 = vmatpush1.msra.mxu0 0.0
  %356 = vmatprep.subr.mxu0 0.0
  %357 = vmatpush1.msra.mxu0 0.0
  %358 = vmatprep.subr.mxu0 0.0
  %359 = vmatpush1.msra.mxu0 0.0
  %360 = vmatprep.subr.mxu0 0.0
  %361 = vmatpush1.msra.mxu0 0.0
  %362 = vmatprep.subr.mxu0 0.0
  %363 = vmatpush1.msra.mxu0 0.0
  %364 = vmatprep.subr.mxu0 0.0
  %365 = vmatpush1.msra.mxu0 0.0
  %366 = vmatprep.subr.mxu0 0.0
  %367 = vmatpush1.msra.mxu0 0.0
  %368 = vmatprep.subr.mxu0 0.0
  %369 = vmatpush1.msra.mxu0 0.0
  %370 = vmatprep.subr.mxu0 0.0
  %371 = vmatpush1.msra.mxu0 0.0
  %372 = vmatprep.subr.mxu0 0.0
  %373 = vmatpush1.msra.mxu0 0.0
  %374 = vmatprep.subr.mxu0 0.0
  %375 = vmatpush1.msra.mxu0 0.0
  %376 = vmatprep.subr.mxu0 0.0
  %377 = vmatpush1.msra.mxu0 0.0
  %378 = vmatprep.subr.mxu0 0.0
  %379 = vmatpush1.msra.mxu0 0.0
  %380 = vmatprep.subr.mxu0 0.0
  %381 = vmatpush1.msra.mxu0 0.0
  %382 = vmatprep.subr.mxu0 0.0
  %383 = vmatpush1.msra.mxu0 0.0
  %384 = vmatprep.subr.mxu0 0.0
  %385 = vmatpush1.msra.mxu0 0.0
  %386 = vmatprep.subr.mxu0 0.0
  %387 = vmatpush1.msra.mxu0 0.0
  %388 = vmatprep.subr.mxu0 0.0
  %389 = vmatpush1.msra.mxu0 0.0
  %390 = vmatprep.subr.mxu0 0.0
  %391 = vmatpush1.msra.mxu0 0.0
  %392 = vmatprep.subr.mxu0 0.0
  %393 = vmatpush1.msra.mxu0 0.0
  %394 = vmatprep.subr.mxu0 0.0
  %395 = vmatpush1.msra.mxu0 0.0
  %396 = vmatprep.subr.mxu0 0.0
  %397 = vmatpush1.msra.mxu0 0.0
  %398 = vmatprep.subr.mxu0 0.0
  %399 = vmatpush1.msra.mxu0 0.0
  %400 = vmatprep.subr.mxu0 0.0
  %401 = vmatpush1.msra.mxu0 0.0
  %402 = vmatprep.mubr.f32.mxu0 0.0
  %403 = vmatmul.mubr.f32.gmra.mrb[0].mxu0 %v243
  %v404 = vpop.f32.mrb[0].mxu0
  %v405 = vadd.f32 0.0, %v404
  %v406 = vpop.f32.mrb[0].mxu0
  %407 = vmatprep.mubr.f32.mxu0 0.0
  %408 = vmatmul.mubr.f32.gmra.mrb[0].mxu0 %v246
  %v409 = vpop.f32.mrb[0].mxu0
  %v410 = vadd.f32 0.0, %v409
  %v411 = vpop.f32.mrb[0].mxu0
  %412 = vmatprep.mubr.f32.mxu0 0.0
  %413 = vmatmul.mubr.f32.gmra.mrb[0].mxu0 %v249
  %v414 = vpop.f32.mrb[0].mxu0
  %v415 = vadd.f32 0.0, %v414
  %v416 = vpop.f32.mrb[0].mxu0
  %417 = vmatprep.mubr.f32.mxu0 0.0
  %418 = vmatmul.mubr.f32.gmra.mrb[0].mxu0 %v252
  %v419 = vpop.f32.mrb[0].mxu0
  %v420 = vadd.f32 0.0, %v419
  %v421 = vpop.f32.mrb[0].mxu0
  %422 = vmatprep.mubr.f32.mxu0 0.0
  %423 = vmatmul.mubr.f32.gmra.mrb[0].mxu0 %v255
  %v424 = vpop.f32.mrb[0].mxu0
  %v425 = vadd.f32 0.0, %v424
  %v426 = vpop.f32.mrb[0].mxu0
  %427 = vmatprep.mubr.f32.mxu0 0.0
  %428 = vmatmul.mubr.f32.gmra.mrb[0].mxu0 %v258
  %v429 = vpop.f32.mrb[0].mxu0
  %v430 = vadd.f32 0.0, %v429
  %v431 = vpop.f32.mrb[0].mxu0
  %432 = vmatprep.mubr.f32.mxu0 0.0
  %433 = vmatmul.mubr.f32.gmra.mrb[0].mxu0 %v261
  %v434 = vpop.f32.mrb[0].mxu0
  %v435 = vadd.f32 0.0, %v434
  %v436 = vpop.f32.mrb[0].mxu0
  %437 = vmatprep.mubr.f32.mxu0 0.0
  %438 = vmatmul.mubr.f32.gmra.mrb[0].mxu0 %v264
  %v439 = vpop.f32.mrb[0].mxu0
  %v440 = vadd.f32 0.0, %v439
  %v441 = vpop.f32.mrb[0].mxu0
  %442 = vmatprep.mubr.f32.mxu0 0.0
  %443 = vmatmul.mubr.f32.gmra.mrb[0].mxu0 %v267
  %v444 = vpop.f32.mrb[0].mxu0
  %v445 = vadd.f32 0.0, %v444
  %v446 = vpop.f32.mrb[0].mxu0
  %447 = vmatprep.mubr.f32.mxu0 0.0
  %448 = vmatmul.mubr.f32.gmra.mrb[0].mxu0 %v270
  %v449 = vpop.f32.mrb[0].mxu0
  %v450 = vadd.f32 0.0, %v449
  %v451 = vpop.f32.mrb[0].mxu0
  %452 = vmatprep.mubr.f32.mxu0 0.0
  %453 = vmatmul.mubr.f32.gmra.mrb[0].mxu0 %v273
  %v454 = vpop.f32.mrb[0].mxu0
  %v455 = vadd.f32 0.0, %v454
  %v456 = vpop.f32.mrb[0].mxu0
  %457 = vmatprep.mubr.f32.mxu0 0.0
  %458 = vmatmul.mubr.f32.gmra.mrb[0].mxu0 %v276
  %v459 = vpop.f32.mrb[0].mxu0
  %v460 = vadd.f32 0.0, %v459
  %v461 = vpop.f32.mrb[0].mxu0
  %462 = vmatprep.mubr.f32.mxu0 0.0
  %463 = vmatmul.mubr.f32.gmra.mrb[0].mxu0 %v279
  %v464 = vpop.f32.mrb[0].mxu0
  %v465 = vadd.f32 0.0, %v464
  %v466 = vpop.f32.mrb[0].mxu0
  %467 = vmatprep.mubr.f32.mxu0 0.0
  %468 = vmatmul.mubr.f32.gmra.mrb[0].mxu0 %v282
  %v469 = vpop.f32.mrb[0].mxu0
  %v470 = vadd.f32 0.0, %v469
  %v471 = vpop.f32.mrb[0].mxu0
  %472 = vmatprep.mubr.f32.mxu0 0.0
  %473 = vmatmul.mubr.f32.gmra.mrb[0].mxu0 %v285
  %v474 = vpop.f32.mrb[0].mxu0
  %v475 = vadd.f32 0.0, %v474
  %v476 = vpop.f32.mrb[0].mxu0
  %477 = vmatprep.mubr.f32.mxu0 0.0
  %478 = vmatmul.mubr.f32.gmra.mrb[0].mxu0 %v288
  %v479 = vpop.f32.mrb[0].mxu0
  %v480 = vadd.f32 0.0, %v479
  %v481 = vpop.f32.mrb[0].mxu0
  %482 = vmatprep.mubr.f32.mxu0 0.0
  %483 = vmatmul.mubr.f32.gmra.mrb[0].mxu0 %v291
  %v484 = vpop.f32.mrb[0].mxu0
  %v485 = vadd.f32 0.0, %v484
  %v486 = vpop.f32.mrb[0].mxu0
  %487 = vmatprep.mubr.f32.mxu0 0.0
  %488 = vmatmul.mubr.f32.gmra.mrb[0].mxu0 %v294
  %v489 = vpop.f32.mrb[0].mxu0
  %v490 = vadd.f32 0.0, %v489
  %v491 = vpop.f32.mrb[0].mxu0
  %492 = vmatprep.mubr.f32.mxu0 0.0
  %493 = vmatmul.mubr.f32.gmra.mrb[0].mxu0 %v297
  %v494 = vpop.f32.mrb[0].mxu0
  %v495 = vadd.f32 0.0, %v494
  %v496 = vpop.f32.mrb[0].mxu0
  %497 = vmatprep.mubr.f32.mxu0 0.0
  %498 = vmatmul.mubr.f32.gmra.mrb[0].mxu0 %v300
  %v499 = vpop.f32.mrb[0].mxu0
  %v500 = vadd.f32 0.0, %v499
  %v501 = vpop.f32.mrb[0].mxu0
  %502 = vmatprep.mubr.f32.mxu0 0.0
  %503 = vmatmul.mubr.f32.gmra.mrb[0].mxu0 %v303
  %v504 = vpop.f32.mrb[0].mxu0
  %v505 = vadd.f32 0.0, %v504
  %v506 = vpop.f32.mrb[0].mxu0
  %507 = vmatprep.mubr.f32.mxu0 0.0
  %508 = vmatmul.mubr.f32.gmra.mrb[0].mxu0 %v306
  %v509 = vpop.f32.mrb[0].mxu0
  %v510 = vadd.f32 0.0, %v509
  %v511 = vpop.f32.mrb[0].mxu0
  %512 = vmatprep.mubr.f32.mxu0 0.0
  %513 = vmatmul.mubr.f32.gmra.mrb[0].mxu0 %v309
  %v514 = vpop.f32.mrb[0].mxu0
  %v515 = vadd.f32 0.0, %v514
  %v516 = vpop.f32.mrb[0].mxu0
  %517 = vmatprep.mubr.f32.mxu0 0.0
  %518 = vmatmul.mubr.f32.gmra.mrb[0].mxu0 %v312
  %v519 = vpop.f32.mrb[0].mxu0
  %v520 = vadd.f32 0.0, %v519
  %v521 = vpop.f32.mrb[0].mxu0
  %522 = vmatprep.mubr.f32.mxu0 0.0
  %523 = vmatmul.mubr.f32.gmra.mrb[0].mxu0 %v315
  %v524 = vpop.f32.mrb[0].mxu0
  %v525 = vadd.f32 0.0, %v524
  %v526 = vpop.f32.mrb[0].mxu0
  %527 = vmatprep.mubr.f32.mxu0 0.0
  %528 = vmatmul.mubr.f32.gmra.mrb[0].mxu0 %v318
  %v529 = vpop.f32.mrb[0].mxu0
  %v530 = vadd.f32 0.0, %v529
  %v531 = vpop.f32.mrb[0].mxu0
  %532 = vmatprep.mubr.f32.mxu0 0.0
  %533 = vmatmul.mubr.f32.gmra.mrb[0].mxu0 %v321
  %v534 = vpop.f32.mrb[0].mxu0
  %v535 = vadd.f32 0.0, %v534
  %v536 = vpop.f32.mrb[0].mxu0
  %537 = vmatprep.mubr.f32.mxu0 0.0
  %538 = vmatmul.mubr.f32.gmra.mrb[0].mxu0 %v324
  %v539 = vpop.f32.mrb[0].mxu0
  %v540 = vadd.f32 0.0, %v539
  %v541 = vpop.f32.mrb[0].mxu0
  %542 = vmatprep.mubr.f32.mxu0 0.0
  %543 = vmatmul.mubr.f32.gmra.mrb[0].mxu0 %v327
  %v544 = vpop.f32.mrb[0].mxu0
  %v545 = vadd.f32 0.0, %v544
  %v546 = vpop.f32.mrb[0].mxu0
  %547 = vmatprep.mubr.f32.mxu0 0.0
  %548 = vmatmul.mubr.f32.gmra.mrb[0].mxu0 %v330
  %v549 = vpop.f32.mrb[0].mxu0
  %v550 = vadd.f32 0.0, %v549
  %v551 = vpop.f32.mrb[0].mxu0
  %552 = vmatprep.mubr.f32.mxu0 0.0
  %553 = vmatmul.mubr.f32.gmra.mrb[0].mxu0 %v333
  %v554 = vpop.f32.mrb[0].mxu0
  %v555 = vadd.f32 0.0, %v554
  %v556 = vpop.f32.mrb[0].mxu0
  %557 = vmatprep.mubr.f32.mxu0 0.0
  %558 = vmatmul.mubr.f32.gmra.mrb[0].mxu0 %v336
  %v559 = vpop.f32.mrb[0].mxu0
  %v560 = vadd.f32 0.0, %v559
  %v561 = vpop.f32.mrb[0].mxu0
  %562 = vdwg.mxu0
  %vm563 = vcmp.lt.s32.totalorder %v46, 32
  %v564 = vmul.f32 %v405, %v485
  %v565 = vmul.f32 %v410, %v490
  %v566 = vmul.f32 %v415, %v495
  %v567 = vmul.f32 %v420, %v500
  %v568 = vmul.f32 %v425, %v505
  %v569 = vmul.f32 %v430, %v510
  %v570 = vmul.f32 %v435, %v515
  %v571 = vmul.f32 %v440, %v520
  %v572 = vmul.f32 %v445, %v525
  %v573 = vmul.f32 %v450, %v530
  %v574 = vmul.f32 %v455, %v535
  %v575 = vmul.f32 %v460, %v540
  %v576 = vmul.f32 %v465, %v545
  %v577 = vmul.f32 %v470, %v550
  %v578 = vmul.f32 %v475, %v555
  %v579 = vmul.f32 %v480, %v560
  %v580 = vsel %vm563, %v564, 0.0
  %v581 = vsel %vm563, %v565, 0.0
  %v582 = vsel %vm563, %v566, 0.0
  %v583 = vsel %vm563, %v567, 0.0
  %v584 = vsel %vm563, %v568, 0.0
  %v585 = vsel %vm563, %v569, 0.0
  %v586 = vsel %vm563, %v570, 0.0
  %v587 = vsel %vm563, %v571, 0.0
  %v588 = vsel %vm563, %v572, 0.0
  %v589 = vsel %vm563, %v573, 0.0
  %v590 = vsel %vm563, %v574, 0.0
  %v591 = vsel %vm563, %v575, 0.0
  %v592 = vsel %vm563, %v576, 0.0
  %v593 = vsel %vm563, %v577, 0.0
  %v594 = vsel %vm563, %v578, 0.0
  %v595 = vsel %vm563, %v579, 0.0
  %596 = vadd.xlane.f32.xlu0 %v580
  %v597 = vpop.xlane.xlu0 %596
  %598 = vadd.xlane.f32.xlu0 %v581
  %v599 = vpop.xlane.xlu0 %598
  %600 = vadd.xlane.f32.xlu0 %v582
  %v601 = vpop.xlane.xlu0 %600
  %602 = vadd.xlane.f32.xlu0 %v583
  %v603 = vpop.xlane.xlu0 %602
  %604 = vadd.xlane.f32.xlu0 %v584
  %v605 = vpop.xlane.xlu0 %604
  %606 = vadd.xlane.f32.xlu0 %v585
  %v607 = vpop.xlane.xlu0 %606
  %608 = vadd.xlane.f32.xlu0 %v586
  %v609 = vpop.xlane.xlu0 %608
  %610 = vadd.xlane.f32.xlu0 %v587
  %v611 = vpop.xlane.xlu0 %610
  %612 = vadd.xlane.f32.xlu0 %v588
  %v613 = vpop.xlane.xlu0 %612
  %614 = vadd.xlane.f32.xlu0 %v589
  %v615 = vpop.xlane.xlu0 %614
  %616 = vadd.xlane.f32.xlu0 %v590
  %v617 = vpop.xlane.xlu0 %616
  %618 = vadd.xlane.f32.xlu0 %v591
  %v619 = vpop.xlane.xlu0 %618
  %620 = vadd.xlane.f32.xlu0 %v592
  %v621 = vpop.xlane.xlu0 %620
  %622 = vadd.xlane.f32.xlu0 %v593
  %v623 = vpop.xlane.xlu0 %622
  %624 = vadd.xlane.f32.xlu0 %v594
  %v625 = vpop.xlane.xlu0 %624
  %626 = vadd.xlane.f32.xlu0 %v595
  %v627 = vpop.xlane.xlu0 %626
  %vm628 = vcmask 7168
  %629 = vst.msk [vmem:[%s2] sm:$0xff] %vm628, %v597
  %630 = vst.msk [vmem:[%s2 + $0x8] sm:$0xff] %vm628, %v599
  %631 = vst.msk [vmem:[%s2 + $0x10] sm:$0xff] %vm628, %v601
  %632 = vst.msk [vmem:[%s2 + $0x18] sm:$0xff] %vm628, %v603
  %633 = vst.msk [vmem:[%s2 + $0x20] sm:$0xff] %vm628, %v605
  %634 = vst.msk [vmem:[%s2 + $0x28] sm:$0xff] %vm628, %v607
  %635 = vst.msk [vmem:[%s2 + $0x30] sm:$0xff] %vm628, %v609
  %636 = vst.msk [vmem:[%s2 + $0x38] sm:$0xff] %vm628, %v611
  %637 = vst.msk [vmem:[%s2 + $0x40] sm:$0xff] %vm628, %v613
  %638 = vst.msk [vmem:[%s2 + $0x48] sm:$0xff] %vm628, %v615
  %639 = vst.msk [vmem:[%s2 + $0x50] sm:$0xff] %vm628, %v617
  %640 = vst.msk [vmem:[%s2 + $0x58] sm:$0xff] %vm628, %v619
  %641 = vst.msk [vmem:[%s2 + $0x60] sm:$0xff] %vm628, %v621
  %642 = vst.msk [vmem:[%s2 + $0x68] sm:$0xff] %vm628, %v623
  %643 = vst.msk [vmem:[%s2 + $0x70] sm:$0xff] %vm628, %v625
  %644 = vst.msk [vmem:[%s2 + $0x78] sm:$0xff] %vm628, %v627
  %vm645 = vcmp.eq.s32.totalorder %v46, 32
  %v646 = vadd.f32 %v405, %v485
  %v647 = vadd.f32 %v410, %v490
  %v648 = vadd.f32 %v415, %v495
  %v649 = vadd.f32 %v420, %v500
  %v650 = vadd.f32 %v425, %v505
  %v651 = vadd.f32 %v430, %v510
  %v652 = vadd.f32 %v435, %v515
  %v653 = vadd.f32 %v440, %v520
  %v654 = vadd.f32 %v445, %v525
  %v655 = vadd.f32 %v450, %v530
  %v656 = vadd.f32 %v455, %v535
  %v657 = vadd.f32 %v460, %v540
  %v658 = vadd.f32 %v465, %v545
  %v659 = vadd.f32 %v470, %v550
  %v660 = vadd.f32 %v475, %v555
  %v661 = vadd.f32 %v480, %v560
  %v662 = vsel %vm645, %v646, 0.0
  %v663 = vsel %vm645, %v647, 0.0
  %v664 = vsel %vm645, %v648, 0.0
  %v665 = vsel %vm645, %v649, 0.0
  %v666 = vsel %vm645, %v650, 0.0
  %v667 = vsel %vm645, %v651, 0.0
  %v668 = vsel %vm645, %v652, 0.0
  %v669 = vsel %vm645, %v653, 0.0
  %v670 = vsel %vm645, %v654, 0.0
  %v671 = vsel %vm645, %v655, 0.0
  %v672 = vsel %vm645, %v656, 0.0
  %v673 = vsel %vm645, %v657, 0.0
  %v674 = vsel %vm645, %v658, 0.0
  %v675 = vsel %vm645, %v659, 0.0
  %v676 = vsel %vm645, %v660, 0.0
  %v677 = vsel %vm645, %v661, 0.0
  %678 = vadd.xlane.f32.xlu0 %v662
  %v679 = vpop.xlane.xlu0 %678
  %680 = vadd.xlane.f32.xlu0 %v663
  %v681 = vpop.xlane.xlu0 %680
  %682 = vadd.xlane.f32.xlu0 %v664
  %v683 = vpop.xlane.xlu0 %682
  %684 = vadd.xlane.f32.xlu0 %v665
  %v685 = vpop.xlane.xlu0 %684
  %686 = vadd.xlane.f32.xlu0 %v666
  %v687 = vpop.xlane.xlu0 %686
  %688 = vadd.xlane.f32.xlu0 %v667
  %v689 = vpop.xlane.xlu0 %688
  %690 = vadd.xlane.f32.xlu0 %v668
  %v691 = vpop.xlane.xlu0 %690
  %692 = vadd.xlane.f32.xlu0 %v669
  %v693 = vpop.xlane.xlu0 %692
  %694 = vadd.xlane.f32.xlu0 %v670
  %v695 = vpop.xlane.xlu0 %694
  %696 = vadd.xlane.f32.xlu0 %v671
  %v697 = vpop.xlane.xlu0 %696
  %698 = vadd.xlane.f32.xlu0 %v672
  %v699 = vpop.xlane.xlu0 %698
  %700 = vadd.xlane.f32.xlu0 %v673
  %v701 = vpop.xlane.xlu0 %700
  %702 = vadd.xlane.f32.xlu0 %v674
  %v703 = vpop.xlane.xlu0 %702
  %704 = vadd.xlane.f32.xlu0 %v675
  %v705 = vpop.xlane.xlu0 %704
  %706 = vadd.xlane.f32.xlu0 %v676
  %v707 = vpop.xlane.xlu0 %706
  %708 = vadd.xlane.f32.xlu0 %v677
  %v709 = vpop.xlane.xlu0 %708
  %710 = vst.msk [vmem:[%s3] sm:$0xff] %vm628, %v679
  %711 = vst.msk [vmem:[%s3 + $0x8] sm:$0xff] %vm628, %v681
  %712 = vst.msk [vmem:[%s3 + $0x10] sm:$0xff] %vm628, %v683
  %713 = vst.msk [vmem:[%s3 + $0x18] sm:$0xff] %vm628, %v685
  %714 = vst.msk [vmem:[%s3 + $0x20] sm:$0xff] %vm628, %v687
  %715 = vst.msk [vmem:[%s3 + $0x28] sm:$0xff] %vm628, %v689
  %716 = vst.msk [vmem:[%s3 + $0x30] sm:$0xff] %vm628, %v691
  %717 = vst.msk [vmem:[%s3 + $0x38] sm:$0xff] %vm628, %v693
  %718 = vst.msk [vmem:[%s3 + $0x40] sm:$0xff] %vm628, %v695
  %719 = vst.msk [vmem:[%s3 + $0x48] sm:$0xff] %vm628, %v697
  %720 = vst.msk [vmem:[%s3 + $0x50] sm:$0xff] %vm628, %v699
  %721 = vst.msk [vmem:[%s3 + $0x58] sm:$0xff] %vm628, %v701
  %722 = vst.msk [vmem:[%s3 + $0x60] sm:$0xff] %vm628, %v703
  %723 = vst.msk [vmem:[%s3 + $0x68] sm:$0xff] %vm628, %v705
  %724 = vst.msk [vmem:[%s3 + $0x70] sm:$0xff] %vm628, %v707
  %725 = vst.msk [vmem:[%s3 + $0x78] sm:$0xff] %vm628, %v709
  // Predicated region
  $region10: #{item_to_item_score.2} parent=0 // pred_check
    _
  $region11: #{item_to_item_score.2} parent=0 // pred_check_branch
    %727 = sbr.rel (0) target = $region13
  $region12: #{item_to_item_score.2} parent=0 // pred_region
    _
  $region13: #{item_to_item_score.2} parent=0 // pred_fallthru
    _
  // Predicated region
  $region14: #{item_to_item_score.2} parent=0 // pred_check
    _
  $region15: #{item_to_item_score.2} parent=0 // pred_check_branch
    %729 = sbr.rel (0) target = $region17
  $region16: #{item_to_item_score.2} parent=0 // pred_region
    _
  $region17: #{item_to_item_score.2} parent=0 // pred_fallthru
    _
  // Predicated region
  $region18: #{item_to_item_score.2} parent=0 // pred_check
    _
  $region19: #{item_to_item_score.2} parent=0 // pred_check_branch
    %731 = sbr.rel (0) target = $region21
  $region20: #{item_to_item_score.2} parent=0 // pred_region
    _
  $region21: #{item_to_item_score.2} parent=0 // pred_fallthru
    _
  // Predicated region
  $region22: #{item_to_item_score.2} parent=0 // pred_check
    _
  $region23: #{item_to_item_score.2} parent=0 // pred_check_branch
    %733 = sbr.rel (0) target = $region25
  $region24: #{item_to_item_score.2} parent=0 // pred_region
    _
  $region25: #{item_to_item_score.2} parent=0 // pred_fallthru
    _

</llo_original>
